<compile_context>
chip_gen: v6e
topology: v6e:2x2x1
jax: 0.10.0
libtpu: 0.0.40
codegen_flags: <defaults>
</compile_context>

<pallas_src>
import jax
import jax.numpy as jnp
from jax import lax
from jax.experimental import pallas as pl
from jax.experimental.pallas import tpu as pltpu

# ---- module hyperparameters (consistent with the __init__ signature) ----
NUM_PHI_LAYERS = 2       # psi: EigenMLP layers
NUM_RHO_LAYERS = 3       # gin: -> 2 GINConv layers + out_proj
NUM_VECS = 4             # J
EIGEN_DIM = 32           # D  (GIN embed dim)
PHI_DIM = 16
INNER_DIM = 16           # K
PE_DIM = 8               # P
BN_EPS = 1e-5

# Safe on v5e/v6e/v7x default scoped-VMEM budgets; raise on v6e (128 MiB physical),
# keep <= ~48 MiB on v7x (64 MiB physical).
VMEM_LIMIT_BYTES = 32 * 1024 * 1024


# ----------------------------------------------------------------------------
# Kernel 1: fused psi (EigenMLP, 2 layers + out_proj) + eigen-tensor build.
# Grid = (B,), "arbitrary" (sequential) so the psi result can be cached in scratch.
# Step 0:
#   E      = psi(eigvals)            -> e_scr   (BatchNorm over ALL B*J rows)
# Every step b:
#   M[j,:] = V[b,:,j] (x) E[b,j,:]   (l-major, k-minor lanes)
#   T2[b]  = V[b] @ M                ([Nmax, J] @ [J, Nmax*K], lane-dense store)
# ----------------------------------------------------------------------------
def _eigen_psi_kernel(lam_ref, v_ref, vt_ref,
                      w1_ref, b1_ref, g1_ref, be1_ref,
                      w2_ref, b2_ref, g2_ref, be2_ref,
                      wo_ref, bo_ref,
                      o_ref, e_scr):
    b = pl.program_id(0)
    J, K = NUM_VECS, INNER_DIM
    Nmax = v_ref.shape[1]

    # --- psi on ALL eigenvalues, computed once and cached in VMEM scratch ---
    @pl.when(b == 0)
    def _():
        x = lam_ref[...]                                          # [B*J, 1]
        h = x * w1_ref[...] + b1_ref[...]                         # Linear(1 -> phi)
        mu = jnp.mean(h, axis=0, keepdims=True)
        var = jnp.mean((h - mu) ** 2, axis=0, keepdims=True)
        h = (h - mu) * lax.rsqrt(var + BN_EPS) * g1_ref[...] + be1_ref[...]
        h = jnp.maximum(h, 0.0)
        h = jnp.dot(h, w2_ref[...], preferred_element_type=jnp.float32) + b2_ref[...]
        mu = jnp.mean(h, axis=0, keepdims=True)
        var = jnp.mean((h - mu) ** 2, axis=0, keepdims=True)
        h = (h - mu) * lax.rsqrt(var + BN_EPS) * g2_ref[...] + be2_ref[...]
        h = jnp.maximum(h, 0.0)
        e_scr[...] = jnp.dot(h, wo_ref[...],
                             preferred_element_type=jnp.float32) + bo_ref[...]  # [B*J, K]

    # rows belonging to graph b
    E_b = e_scr[pl.ds(b * J, J), :]                           # [J, K]
    Vb = v_ref[0]                                             # [Nmax, J]
    Vt = vt_ref[0]                                            # [J, Nmax]  (pre-transposed)

    # M[j, l*K + k] = V[l, j] * E[j, k]   (only J=4 rows -> cheap to build)
    M = (Vt[:, :, None] * E_b[:, None, :]).reshape(J, Nmax * K)    # [J, Nmax*K]
    o_ref[0] = jnp.dot(Vb, M, preferred_element_type=jnp.float32)  # [Nmax, Nmax*K]


def run_eigen_psi(lam_flat, V, Vt_all, p):
    B, Nmax, J = V.shape
    BJ = lam_flat.shape[0]
    LK = Nmax * INNER_DIM
    return pl.pallas_call(
        _eigen_psi_kernel,
        out_shape=jax.ShapeDtypeStruct((B, Nmax, LK), jnp.float32),
        grid=(B,),
        in_specs=[
            pl.BlockSpec((BJ, 1), lambda b: (0, 0)),              # all eigvals (BN)
            pl.BlockSpec((1, Nmax, J), lambda b: (b, 0, 0)),      # V[b]
            pl.BlockSpec((1, J, Nmax), lambda b: (b, 0, 0)),      # V[b]^T
            pl.BlockSpec((1, PHI_DIM), lambda b: (0, 0)),
            pl.BlockSpec((1, PHI_DIM), lambda b: (0, 0)),
            pl.BlockSpec((1, PHI_DIM), lambda b: (0, 0)),
            pl.BlockSpec((1, PHI_DIM), lambda b: (0, 0)),
            pl.BlockSpec((PHI_DIM, PHI_DIM), lambda b: (0, 0)),
            pl.BlockSpec((1, PHI_DIM), lambda b: (0, 0)),
            pl.BlockSpec((1, PHI_DIM), lambda b: (0, 0)),
            pl.BlockSpec((1, PHI_DIM), lambda b: (0, 0)),
            pl.BlockSpec((PHI_DIM, INNER_DIM), lambda b: (0, 0)),
            pl.BlockSpec((1, INNER_DIM), lambda b: (0, 0)),
        ],
        out_specs=pl.BlockSpec((1, Nmax, LK), lambda b: (b, 0, 0)),
        scratch_shapes=[pltpu.VMEM((BJ, INNER_DIM), jnp.float32)],
        compiler_params=pltpu.CompilerParams(
            # 'arbitrary' (sequential) so the psi result cached at step 0 is valid for
            # every later step; measured cost vs 'parallel' is ~0 on a single TC.
            dimension_semantics=("arbitrary",),
            vmem_limit_bytes=VMEM_LIMIT_BYTES),
    )(lam_flat, V, Vt_all,
      p['psi_w1'], p['psi_b1'], p['psi_g1'], p['psi_be1'],
      p['psi_w2'], p['psi_b2'], p['psi_g2'], p['psi_be2'],
      p['psi_wo'], p['psi_bo'])


# ----------------------------------------------------------------------------
# Kernel 2: EigenGIN (2 GINConv + out_proj) + sum over the L axis.
# Input pe2 is node-major [N, L*K] (l-major, k-minor lanes).  Grid iterates over
# chunks of TL l-slices; everything inside a chunk is a handful of big matmuls.
# ----------------------------------------------------------------------------
def _pick_tl(L, K):
    """Largest TL dividing L with a lane-dense (multiple of 128) chunk width,
    capped so the [N, TL*K] block + intermediates stay inside the VMEM budget.
    (On v6e the cap can be raised; on v7x keep it tight.)"""
    for tl in range(L, 0, -1):
        if L % tl == 0 and (tl * K) % 128 == 0 and tl * K <= 2048:
            return tl
    return L  # fall back (still correct; block then equals the full lane extent)


def run_gin(pe2, A_bf16, p):
    N, LK = pe2.shape
    K, D, P = INNER_DIM, EIGEN_DIM, PE_DIM
    L = LK // K
    TL = _pick_tl(L, K)
    n_chunks = L // TL
    TLK, TLD = TL * K, TL * D

    # Block-diagonal / tiled parameters so one MXU matmul covers all TL slices of a
    # chunk (off-diagonal blocks are exact zeros -> numerically identical per slice).
    eye_tl = jnp.eye(TL, dtype=jnp.float32)
    w0_bd = jnp.kron(eye_tl, p['gin_w0'])                          # [TL*K, TL*D]
    w1_bd = jnp.kron(eye_tl, p['gin_w1'])                          # [TL*D, TL*D]
    b0_t = jnp.tile(p['gin_b0'], (1, TL))                          # [1, TL*D]
    b1_t = jnp.tile(p['gin_b1'], (1, TL))                          # [1, TL*D]
    sum_mat = jnp.tile(jnp.eye(D, dtype=jnp.float32), (TL, 1))     # [TL*D, D] sum over t

    def gin_kernel(pe_ref, a_ref, w0_ref, b0_ref, w1_ref, b1_ref, sum_ref,
                   wo_ref, bo_ref, o_ref, acc_ref, a32_ref):
        c = pl.program_id(0)

        @pl.when(c == 0)
        def _():
            acc_ref[...] = jnp.zeros_like(acc_ref)
            # bf16 edge counts are exact; up-cast once instead of per chunk.
            a32_ref[...] = a_ref[...].astype(jnp.float32)

        X = pe_ref[...]                                 # [N, TL*K]  (TL l-slices)
        A = a32_ref[...]                                # [N, N] f32 (cached upcast)
        # GINConv 0: ReLU(Linear(x + sum_neighbors x)) for all TL slices at once
        S0 = X + jnp.dot(A, X, preferred_element_type=jnp.float32)
        H0 = jnp.maximum(
            jnp.dot(S0, w0_ref[...], preferred_element_type=jnp.float32) + b0_ref[...],
            0.0)                                        # [N, TL*D]
        # GINConv 1 + residual
        S1 = H0 + jnp.dot(A, H0, preferred_element_type=jnp.float32)
        H1 = jnp.maximum(
            jnp.dot(S1, w1_ref[...], preferred_element_type=jnp.float32) + b1_ref[...],
            0.0) + H0                                   # [N, TL*D]
        # partial sum over the TL slices of this chunk (tiled-identity matmul, no
        # lane shuffles); out_proj is hoisted to the final step by linearity.
        acc_ref[...] += jnp.dot(H1, sum_ref[...], preferred_element_type=jnp.float32)

        @pl.when(c == pl.num_programs(0) - 1)
        def _():
            o_ref[...] = (jnp.dot(acc_ref[...], wo_ref[...],
                                  preferred_element_type=jnp.float32)
                          + float(L) * bo_ref[...])

    return pl.pallas_call(
        gin_kernel,
        out_shape=jax.ShapeDtypeStruct((N, P), jnp.float32),
        grid=(n_chunks,),
        in_specs=[
            pl.BlockSpec((N, TLK), lambda c: (0, c)),   # pe chunk (lane-dense)
            pl.BlockSpec((N, N), lambda c: (0, 0)),     # adjacency (bf16, fetched once)
            pl.BlockSpec((TLK, TLD), lambda c: (0, 0)),
            pl.BlockSpec((1, TLD), lambda c: (0, 0)),
            pl.BlockSpec((TLD, TLD), lambda c: (0, 0)),
            pl.BlockSpec((1, TLD), lambda c: (0, 0)),
            pl.BlockSpec((TLD, D), lambda c: (0, 0)),
            pl.BlockSpec((D, P), lambda c: (0, 0)),
            pl.BlockSpec((1, P), lambda c: (0, 0)),
        ],
        out_specs=pl.BlockSpec((N, P), lambda c: (0, 0)),
        scratch_shapes=[pltpu.VMEM((N, D), jnp.float32),    # h1 accumulator
                        pltpu.VMEM((N, N), jnp.float32)],   # cached f32 adjacency
        compiler_params=pltpu.CompilerParams(
            dimension_semantics=("arbitrary",),          # L reduction (accumulator)
            vmem_limit_bytes=VMEM_LIMIT_BYTES),
    )(pe2, A_bf16, w0_bd, b0_t, w1_bd, b1_t, sum_mat, p['gin_wo'], p['gin_bo'])


# ----------------------------------------------------------------------------
# Glue (plain JAX): to_dense_batch, mask gather, dense adjacency, parameters.
# (Data-dependent scatters stay in XLA; everything heavy runs in the two kernels.)
# ----------------------------------------------------------------------------
def to_dense_batch_jax(x, batch, num_graphs, max_nodes):
    # Assumes `batch` is sorted (PyG convention).
    N = x.shape[0]
    counts = jnp.zeros((num_graphs,), jnp.int32).at[batch].add(1)
    ptr = jnp.concatenate(
        [jnp.zeros((1,), jnp.int32), jnp.cumsum(counts)[:-1].astype(jnp.int32)])
    pos = jnp.arange(N, dtype=jnp.int32) - ptr[batch]
    dense = jnp.zeros((num_graphs, max_nodes) + x.shape[1:], x.dtype).at[batch, pos].set(x)
    mask = jnp.zeros((num_graphs, max_nodes), dtype=bool).at[batch, pos].set(True)
    return dense, mask, pos


def equivariant_eigen_embedding(eigvals, eigvecs, edge_index, batch, params,
                                num_graphs, max_nodes):
    J = NUM_VECS
    ev = jnp.where(jnp.isnan(eigvals[:, :J]), 0.0, eigvals[:, :J])   # nan_to_zero
    Vn = jnp.where(jnp.isnan(eigvecs[:, :J]), 0.0, eigvecs[:, :J])

    dense_vals, _, _ = to_dense_batch_jax(ev, batch, num_graphs, max_nodes)
    lam_flat = dense_vals[:, 0, :].reshape(-1, 1)           # [B*J, 1]

    V, _mask, pos = to_dense_batch_jax(Vn, batch, num_graphs, max_nodes)  # [B, Nmax, J]
    Vt_all = jnp.swapaxes(V, 1, 2)                          # [B, J, Nmax] (tiny)

    # fused psi + eigen tensor, emitted node-major [B, Nmax, L*K]
    T2 = run_eigen_psi(lam_flat, V, Vt_all, params)

    # only the mask-gather remains (no transpose of the big intermediate)
    pe2 = T2[batch, pos]                                    # [N, L*K]

    N = batch.shape[0]
    src, dst = edge_index[0], edge_index[1]
    A = (jnp.zeros((N, N), jnp.float32).at[dst, src].add(1.0)).astype(jnp.bfloat16)
    return run_gin(pe2, A, params)                          # [N, pe_dim]


def init_params(key):
    ks = jax.random.split(key, 12)
    f32 = jnp.float32
    p = {}
    p['psi_w1'] = 0.5 * jax.random.normal(ks[0], (1, PHI_DIM), f32)
    p['psi_b1'] = 0.1 * jax.random.normal(ks[1], (1, PHI_DIM), f32)
    p['psi_g1'] = jnp.ones((1, PHI_DIM), f32)
    p['psi_be1'] = jnp.zeros((1, PHI_DIM), f32)
    p['psi_w2'] = 0.3 * jax.random.normal(ks[2], (PHI_DIM, PHI_DIM), f32)
    p['psi_b2'] = 0.1 * jax.random.normal(ks[3], (1, PHI_DIM), f32)
    p['psi_g2'] = jnp.ones((1, PHI_DIM), f32)
    p['psi_be2'] = jnp.zeros((1, PHI_DIM), f32)
    p['psi_wo'] = 0.3 * jax.random.normal(ks[4], (PHI_DIM, INNER_DIM), f32)
    p['psi_bo'] = 0.1 * jax.random.normal(ks[5], (1, INNER_DIM), f32)
    p['gin_w0'] = 0.3 * jax.random.normal(ks[6], (INNER_DIM, EIGEN_DIM), f32)
    p['gin_b0'] = 0.1 * jax.random.normal(ks[7], (1, EIGEN_DIM), f32)
    p['gin_w1'] = 0.3 * jax.random.normal(ks[8], (EIGEN_DIM, EIGEN_DIM), f32)
    p['gin_b1'] = 0.1 * jax.random.normal(ks[9], (1, EIGEN_DIM), f32)
    p['gin_wo'] = 0.3 * jax.random.normal(ks[10], (EIGEN_DIM, PE_DIM), f32)
    p['gin_bo'] = 0.1 * jax.random.normal(ks[11], (1, PE_DIM), f32)
    return p


# Pure-JAX reference (mirrors the PyTorch forward) used for a correctness check.
def reference(eigvals, eigvecs, edge_index, batch, p, num_graphs, max_nodes):
    J = NUM_VECS
    ev = jnp.where(jnp.isnan(eigvals[:, :J]), 0.0, eigvals[:, :J])
    Vn = jnp.where(jnp.isnan(eigvecs[:, :J]), 0.0, eigvecs[:, :J])
    dense_vals, _, _ = to_dense_batch_jax(ev, batch, num_graphs, max_nodes)
    x = dense_vals[:, 0, :].reshape(-1, 1)

    def bn(h):
        mu = h.mean(0, keepdims=True)
        var = ((h - mu) ** 2).mean(0, keepdims=True)
        return (h - mu) / jnp.sqrt(var + BN_EPS)

    h = x * p['psi_w1'] + p['psi_b1']
    h = jnp.maximum(bn(h) * p['psi_g1'] + p['psi_be1'], 0.0)
    h = h @ p['psi_w2'] + p['psi_b2']
    h = jnp.maximum(bn(h) * p['psi_g2'] + p['psi_be2'], 0.0)
    E = (h @ p['psi_wo'] + p['psi_bo']).reshape(num_graphs, J, INNER_DIM)

    V, _mask, pos = to_dense_batch_jax(Vn, batch, num_graphs, max_nodes)
    T = jnp.einsum('bij,bjk,blj->bilk', V, E, V)         # [B, Nmax, L, K]
    pe = T[batch, pos]                                   # [N, L, K] == T[mask]

    src, dst = edge_index[0], edge_index[1]

    def agg(z):
        return jnp.zeros_like(z).at[dst].add(z[src])

    h0 = jnp.maximum((pe + agg(pe)) @ p['gin_w0'] + p['gin_b0'], 0.0)
    h1 = jnp.maximum((h0 + agg(h0)) @ p['gin_w1'] + p['gin_b1'], 0.0) + h0
    y = h1 @ p['gin_wo'] + p['gin_bo']
    return y.sum(1)


if __name__ == "__main__":
    key = jax.random.PRNGKey(0)
    kp, ke, kv, ks, kd = jax.random.split(key, 5)

    num_graphs, nodes_per_graph = 2, 8
    N = num_graphs * nodes_per_graph
    K0 = 6                     # raw eigendim, sliced to NUM_VECS in forward
    num_edges = 32

    params = init_params(kp)
    eigvals = jax.random.normal(ke, (N, K0), jnp.float32)
    eigvecs = jax.random.normal(kv, (N, K0), jnp.float32)
    eigvecs = eigvecs.at[3, 1].set(jnp.nan)              # exercise nan_to_zero
    batch = jnp.repeat(jnp.arange(num_graphs, dtype=jnp.int32), nodes_per_graph)

    per_graph = num_edges // num_graphs
    src = jax.random.randint(ks, (num_graphs, per_graph), 0, nodes_per_graph)
    dst = jax.random.randint(kd, (num_graphs, per_graph), 0, nodes_per_graph)
    offs = (jnp.arange(num_graphs) * nodes_per_graph)[:, None]
    edge_index = jnp.stack([(src + offs).reshape(-1),
                            (dst + offs).reshape(-1)]).astype(jnp.int32)

    out = equivariant_eigen_embedding(eigvals, eigvecs, edge_index, batch,
                                      params, num_graphs, nodes_per_graph)
    out = jax.block_until_ready(out)

    ref = reference(eigvals, eigvecs, edge_index, batch,
                    params, num_graphs, nodes_per_graph)
    assert out.shape == (N, PE_DIM), out.shape
    max_err = float(jnp.max(jnp.abs(out - ref)))
    assert jnp.allclose(out, ref, atol=1e-3, rtol=1e-3), f"max_err={max_err}"
    print("KERNEL_OK")
</pallas_src>

<mosaic_0001>
module attributes {stable_mosaic.version = 11 : i64} {
  func.func @_eigen_psi_kernel(%arg0: i32, %arg1: memref<8x1xf32, #tpu.memory_space<vmem>>, %arg2: memref<1x8x4xf32, #tpu.memory_space<vmem>>, %arg3: memref<1x4x8xf32, #tpu.memory_space<vmem>>, %arg4: memref<1x16xf32, #tpu.memory_space<vmem>>, %arg5: memref<1x16xf32, #tpu.memory_space<vmem>>, %arg6: memref<1x16xf32, #tpu.memory_space<vmem>>, %arg7: memref<1x16xf32, #tpu.memory_space<vmem>>, %arg8: memref<16x16xf32, #tpu.memory_space<vmem>>, %arg9: memref<1x16xf32, #tpu.memory_space<vmem>>, %arg10: memref<1x16xf32, #tpu.memory_space<vmem>>, %arg11: memref<1x16xf32, #tpu.memory_space<vmem>>, %arg12: memref<16x16xf32, #tpu.memory_space<vmem>>, %arg13: memref<1x16xf32, #tpu.memory_space<vmem>>, %arg14: memref<1x8x128xf32, #tpu.memory_space<vmem>>, %arg15: memref<8x16xf32, #tpu.memory_space<vmem>>) attributes {dimension_semantics = [#tpu.dimension_semantics<arbitrary>], iteration_bounds = array<i64: 2>, scalar_prefetch = 0 : i64, scratch_operands = 1 : i64, tpu.core_type = #tpu.core_type<tc>, window_params = [{pipeline_mode = #tpu.pipeline_mode<synchronous>, transform_indices = @transform_0, window_bounds = array<i64: 8, 1>}, {transform_indices = @transform_1, window_bounds = array<i64: 1, 8, 4>}, {transform_indices = @transform_2, window_bounds = array<i64: 1, 4, 8>}, {pipeline_mode = #tpu.pipeline_mode<synchronous>, transform_indices = @transform_3, window_bounds = array<i64: 1, 16>}, {pipeline_mode = #tpu.pipeline_mode<synchronous>, transform_indices = @transform_4, window_bounds = array<i64: 1, 16>}, {pipeline_mode = #tpu.pipeline_mode<synchronous>, transform_indices = @transform_5, window_bounds = array<i64: 1, 16>}, {pipeline_mode = #tpu.pipeline_mode<synchronous>, transform_indices = @transform_6, window_bounds = array<i64: 1, 16>}, {pipeline_mode = #tpu.pipeline_mode<synchronous>, transform_indices = @transform_7, window_bounds = array<i64: 16, 16>}, {pipeline_mode = #tpu.pipeline_mode<synchronous>, transform_indices = @transform_8, window_bounds = array<i64: 1, 16>}, {pipeline_mode = #tpu.pipeline_mode<synchronous>, transform_indices = @transform_9, window_bounds = array<i64: 1, 16>}, {pipeline_mode = #tpu.pipeline_mode<synchronous>, transform_indices = @transform_10, window_bounds = array<i64: 1, 16>}, {pipeline_mode = #tpu.pipeline_mode<synchronous>, transform_indices = @transform_11, window_bounds = array<i64: 16, 16>}, {pipeline_mode = #tpu.pipeline_mode<synchronous>, transform_indices = @transform_12, window_bounds = array<i64: 1, 16>}, {transform_indices = @transform_13, window_bounds = array<i64: 1, 8, 128>}]} {
    %c0_i32 = arith.constant 0 : i32
    %0 = arith.cmpi eq, %arg0, %c0_i32 : i32
    %1 = arith.extui %0 : i1 to i32
    %c0_i32_0 = arith.constant 0 : i32
    %2 = arith.cmpi ne, %1, %c0_i32_0 : i32
    scf.if %2 {
      %c0_10 = arith.constant 0 : index
      %c0_11 = arith.constant 0 : index
      %20 = vector.load %arg1[%c0_10, %c0_11] : memref<8x1xf32, #tpu.memory_space<vmem>>, vector<8x1xf32>
      %c0_12 = arith.constant 0 : index
      %c0_13 = arith.constant 0 : index
      %21 = vector.load %arg4[%c0_12, %c0_13] : memref<1x16xf32, #tpu.memory_space<vmem>>, vector<1x16xf32>
      %22 = vector.broadcast %20 : vector<8x1xf32> to vector<8x16xf32>
      %23 = vector.broadcast %21 : vector<1x16xf32> to vector<8x16xf32>
      %24 = arith.mulf %22, %23 : vector<8x16xf32>
      %c0_14 = arith.constant 0 : index
      %c0_15 = arith.constant 0 : index
      %25 = vector.load %arg5[%c0_14, %c0_15] : memref<1x16xf32, #tpu.memory_space<vmem>>, vector<1x16xf32>
      %26 = vector.broadcast %25 : vector<1x16xf32> to vector<8x16xf32>
      %27 = arith.addf %24, %26 : vector<8x16xf32>
      %cst_16 = arith.constant dense<0.000000e+00> : vector<16xf32>
      %28 = vector.multi_reduction <add>, %27, %cst_16 [0] : vector<8x16xf32> to vector<16xf32>
      %29 = vector.shape_cast %28 : vector<16xf32> to vector<1x16xf32>
      %cst_17 = arith.constant 8.000000e+00 : f32
      %30 = vector.broadcast %cst_17 : f32 to vector<1x16xf32>
      %31 = arith.divf %29, %30 : vector<1x16xf32>
      %32 = vector.broadcast %31 : vector<1x16xf32> to vector<8x16xf32>
      %33 = arith.subf %27, %32 : vector<8x16xf32>
      %34 = arith.mulf %33, %33 : vector<8x16xf32>
      %cst_18 = arith.constant dense<0.000000e+00> : vector<16xf32>
      %35 = vector.multi_reduction <add>, %34, %cst_18 [0] : vector<8x16xf32> to vector<16xf32>
      %36 = vector.shape_cast %35 : vector<16xf32> to vector<1x16xf32>
      %cst_19 = arith.constant 8.000000e+00 : f32
      %37 = vector.broadcast %cst_19 : f32 to vector<1x16xf32>
      %38 = arith.divf %36, %37 : vector<1x16xf32>
      %39 = vector.broadcast %31 : vector<1x16xf32> to vector<8x16xf32>
      %40 = arith.subf %27, %39 : vector<8x16xf32>
      %cst_20 = arith.constant 9.99999974E-6 : f32
      %41 = vector.broadcast %cst_20 : f32 to vector<1x16xf32>
      %42 = arith.addf %38, %41 : vector<1x16xf32>
      %43 = math.rsqrt %42 : vector<1x16xf32>
      %44 = vector.broadcast %43 : vector<1x16xf32> to vector<8x16xf32>
      %45 = arith.mulf %40, %44 : vector<8x16xf32>
      %c0_21 = arith.constant 0 : index
      %c0_22 = arith.constant 0 : index
      %46 = vector.load %arg6[%c0_21, %c0_22] : memref<1x16xf32, #tpu.memory_space<vmem>>, vector<1x16xf32>
      %47 = vector.broadcast %46 : vector<1x16xf32> to vector<8x16xf32>
      %48 = arith.mulf %45, %47 : vector<8x16xf32>
      %c0_23 = arith.constant 0 : index
      %c0_24 = arith.constant 0 : index
      %49 = vector.load %arg7[%c0_23, %c0_24] : memref<1x16xf32, #tpu.memory_space<vmem>>, vector<1x16xf32>
      %50 = vector.broadcast %49 : vector<1x16xf32> to vector<8x16xf32>
      %51 = arith.addf %48, %50 : vector<8x16xf32>
      %cst_25 = arith.constant 0.000000e+00 : f32
      %52 = vector.broadcast %cst_25 : f32 to vector<8x16xf32>
      %53 = arith.maximumf %51, %52 : vector<8x16xf32>
      %c0_26 = arith.constant 0 : index
      %c0_27 = arith.constant 0 : index
      %54 = vector.load %arg8[%c0_26, %c0_27] : memref<16x16xf32, #tpu.memory_space<vmem>>, vector<16x16xf32>
      %cst_28 = arith.constant dense<0.000000e+00> : vector<8x16xf32>
      %55 = tpu.matmul %53, %54, %cst_28 {dimension_numbers = #tpu.dot_dimension_numbers<[1], [0], [0], [1], [0, 0, 1, 1], [], []>} : vector<8x16xf32>, vector<16x16xf32>, vector<8x16xf32> -> vector<8x16xf32>
      %c0_29 = arith.constant 0 : index
      %c0_30 = arith.constant 0 : index
      %56 = vector.load %arg9[%c0_29, %c0_30] : memref<1x16xf32, #tpu.memory_space<vmem>>, vector<1x16xf32>
      %57 = vector.broadcast %56 : vector<1x16xf32> to vector<8x16xf32>
      %58 = arith.addf %55, %57 : vector<8x16xf32>
      %cst_31 = arith.constant dense<0.000000e+00> : vector<16xf32>
      %59 = vector.multi_reduction <add>, %58, %cst_31 [0] : vector<8x16xf32> to vector<16xf32>
      %60 = vector.shape_cast %59 : vector<16xf32> to vector<1x16xf32>
      %cst_32 = arith.constant 8.000000e+00 : f32
      %61 = vector.broadcast %cst_32 : f32 to vector<1x16xf32>
      %62 = arith.divf %60, %61 : vector<1x16xf32>
      %63 = vector.broadcast %62 : vector<1x16xf32> to vector<8x16xf32>
      %64 = arith.subf %58, %63 : vector<8x16xf32>
      %65 = arith.mulf %64, %64 : vector<8x16xf32>
      %cst_33 = arith.constant dense<0.000000e+00> : vector<16xf32>
      %66 = vector.multi_reduction <add>, %65, %cst_33 [0] : vector<8x16xf32> to vector<16xf32>
      %67 = vector.shape_cast %66 : vector<16xf32> to vector<1x16xf32>
      %cst_34 = arith.constant 8.000000e+00 : f32
      %68 = vector.broadcast %cst_34 : f32 to vector<1x16xf32>
      %69 = arith.divf %67, %68 : vector<1x16xf32>
      %70 = vector.broadcast %62 : vector<1x16xf32> to vector<8x16xf32>
      %71 = arith.subf %58, %70 : vector<8x16xf32>
      %cst_35 = arith.constant 9.99999974E-6 : f32
      %72 = vector.broadcast %cst_35 : f32 to vector<1x16xf32>
      %73 = arith.addf %69, %72 : vector<1x16xf32>
      %74 = math.rsqrt %73 : vector<1x16xf32>
      %75 = vector.broadcast %74 : vector<1x16xf32> to vector<8x16xf32>
      %76 = arith.mulf %71, %75 : vector<8x16xf32>
      %c0_36 = arith.constant 0 : index
      %c0_37 = arith.constant 0 : index
      %77 = vector.load %arg10[%c0_36, %c0_37] : memref<1x16xf32, #tpu.memory_space<vmem>>, vector<1x16xf32>
      %78 = vector.broadcast %77 : vector<1x16xf32> to vector<8x16xf32>
      %79 = arith.mulf %76, %78 : vector<8x16xf32>
      %c0_38 = arith.constant 0 : index
      %c0_39 = arith.constant 0 : index
      %80 = vector.load %arg11[%c0_38, %c0_39] : memref<1x16xf32, #tpu.memory_space<vmem>>, vector<1x16xf32>
      %81 = vector.broadcast %80 : vector<1x16xf32> to vector<8x16xf32>
      %82 = arith.addf %79, %81 : vector<8x16xf32>
      %cst_40 = arith.constant 0.000000e+00 : f32
      %83 = vector.broadcast %cst_40 : f32 to vector<8x16xf32>
      %84 = arith.maximumf %82, %83 : vector<8x16xf32>
      %c0_41 = arith.constant 0 : index
      %c0_42 = arith.constant 0 : index
      %85 = vector.load %arg12[%c0_41, %c0_42] : memref<16x16xf32, #tpu.memory_space<vmem>>, vector<16x16xf32>
      %cst_43 = arith.constant dense<0.000000e+00> : vector<8x16xf32>
      %86 = tpu.matmul %84, %85, %cst_43 {dimension_numbers = #tpu.dot_dimension_numbers<[1], [0], [0], [1], [0, 0, 1, 1], [], []>} : vector<8x16xf32>, vector<16x16xf32>, vector<8x16xf32> -> vector<8x16xf32>
      %c0_44 = arith.constant 0 : index
      %c0_45 = arith.constant 0 : index
      %87 = vector.load %arg13[%c0_44, %c0_45] : memref<1x16xf32, #tpu.memory_space<vmem>>, vector<1x16xf32>
      %88 = vector.broadcast %87 : vector<1x16xf32> to vector<8x16xf32>
      %89 = arith.addf %86, %88 : vector<8x16xf32>
      %c0_46 = arith.constant 0 : index
      %c0_47 = arith.constant 0 : index
      %90 = vector.load %arg15[%c0_46, %c0_47] : memref<8x16xf32, #tpu.memory_space<vmem>>, vector<8x16xf32>
      tpu.vector_store %arg15[%c0_46, %c0_47], %89 {strides = array<i32>} : memref<8x16xf32, #tpu.memory_space<vmem>>, vector<8x16xf32>,
    } else {
    }
    %c4_i32 = arith.constant 4 : i32
    %3 = arith.muli %arg0, %c4_i32 : i32
    %4 = arith.index_cast %3 : i32 to index
    %c0 = arith.constant 0 : index
    %5 = vector.load %arg15[%4, %c0] : memref<8x16xf32, #tpu.memory_space<vmem>>, vector<4x16xf32>
    %c0_1 = arith.constant 0 : index
    %c0_2 = arith.constant 0 : index
    %c0_3 = arith.constant 0 : index
    %6 = vector.load %arg2[%c0_1, %c0_2, %c0_3] : memref<1x8x4xf32, #tpu.memory_space<vmem>>, vector<1x8x4xf32>
    %7 = vector.shape_cast %6 : vector<1x8x4xf32> to vector<8x4xf32>
    %c0_4 = arith.constant 0 : index
    %c0_5 = arith.constant 0 : index
    %c0_6 = arith.constant 0 : index
    %8 = vector.load %arg3[%c0_4, %c0_5, %c0_6] : memref<1x4x8xf32, #tpu.memory_space<vmem>>, vector<1x4x8xf32>
    %9 = vector.shape_cast %8 : vector<1x4x8xf32> to vector<4x8xf32>
    %10 = vector.shape_cast %9 : vector<4x8xf32> to vector<4x8x1xf32>
    %11 = vector.shape_cast %5 : vector<4x16xf32> to vector<4x1x16xf32>
    %12 = vector.broadcast %10 : vector<4x8x1xf32> to vector<4x8x16xf32>
    %13 = vector.broadcast %11 : vector<4x1x16xf32> to vector<4x8x16xf32>
    %14 = arith.mulf %12, %13 : vector<4x8x16xf32>
    %15 = vector.shape_cast %14 : vector<4x8x16xf32> to vector<4x128xf32>
    %cst = arith.constant dense<0.000000e+00> : vector<8x128xf32>
    %16 = tpu.matmul %7, %15, %cst {dimension_numbers = #tpu.dot_dimension_numbers<[1], [0], [0], [1], [0, 0, 1, 1], [], []>} : vector<8x4xf32>, vector<4x128xf32>, vector<8x128xf32> -> vector<8x128xf32>
    %c0_7 = arith.constant 0 : index
    %c0_8 = arith.constant 0 : index
    %c0_9 = arith.constant 0 : index
    %17 = vector.load %arg14[%c0_7, %c0_8, %c0_9] : memref<1x8x128xf32, #tpu.memory_space<vmem>>, vector<1x8x128xf32>
    %18 = vector.shape_cast %17 : vector<1x8x128xf32> to vector<8x128xf32>
    %19 = vector.shape_cast %16 : vector<8x128xf32> to vector<1x8x128xf32>
    tpu.vector_store %arg14[%c0_7, %c0_8, %c0_9], %19 {strides = array<i32>} : memref<1x8x128xf32, #tpu.memory_space<vmem>>, vector<1x8x128xf32>,
    return
  }
  func.func @transform_0(%arg0: i32) -> (i32, i32) {
    %c0_i32 = arith.constant 0 : i32
    %c0_i32_0 = arith.constant 0 : i32
    %c0_i32_1 = arith.constant 0 : i32
    return %c0_i32, %c0_i32_0 : i32, i32
  }
  func.func @transform_1(%arg0: i32) -> (i32, i32, i32) {
    %c0_i32 = arith.constant 0 : i32
    %c0_i32_0 = arith.constant 0 : i32
    %c0_i32_1 = arith.constant 0 : i32
    return %arg0, %c0_i32, %c0_i32_0 : i32, i32, i32
  }
  func.func @transform_2(%arg0: i32) -> (i32, i32, i32) {
    %c0_i32 = arith.constant 0 : i32
    %c0_i32_0 = arith.constant 0 : i32
    %c0_i32_1 = arith.constant 0 : i32
    return %arg0, %c0_i32, %c0_i32_0 : i32, i32, i32
  }
  func.func @transform_3(%arg0: i32) -> (i32, i32) {
    %c0_i32 = arith.constant 0 : i32
    %c0_i32_0 = arith.constant 0 : i32
    %c0_i32_1 = arith.constant 0 : i32
    return %c0_i32, %c0_i32_0 : i32, i32
  }
  func.func @transform_4(%arg0: i32) -> (i32, i32) {
    %c0_i32 = arith.constant 0 : i32
    %c0_i32_0 = arith.constant 0 : i32
    %c0_i32_1 = arith.constant 0 : i32
    return %c0_i32, %c0_i32_0 : i32, i32
  }
  func.func @transform_5(%arg0: i32) -> (i32, i32) {
    %c0_i32 = arith.constant 0 : i32
    %c0_i32_0 = arith.constant 0 : i32
    %c0_i32_1 = arith.constant 0 : i32
    return %c0_i32, %c0_i32_0 : i32, i32
  }
  func.func @transform_6(%arg0: i32) -> (i32, i32) {
    %c0_i32 = arith.constant 0 : i32
    %c0_i32_0 = arith.constant 0 : i32
    %c0_i32_1 = arith.constant 0 : i32
    return %c0_i32, %c0_i32_0 : i32, i32
  }
  func.func @transform_7(%arg0: i32) -> (i32, i32) {
    %c0_i32 = arith.constant 0 : i32
    %c0_i32_0 = arith.constant 0 : i32
    %c0_i32_1 = arith.constant 0 : i32
    return %c0_i32, %c0_i32_0 : i32, i32
  }
  func.func @transform_8(%arg0: i32) -> (i32, i32) {
    %c0_i32 = arith.constant 0 : i32
    %c0_i32_0 = arith.constant 0 : i32
    %c0_i32_1 = arith.constant 0 : i32
    return %c0_i32, %c0_i32_0 : i32, i32
  }
  func.func @transform_9(%arg0: i32) -> (i32, i32) {
    %c0_i32 = arith.constant 0 : i32
    %c0_i32_0 = arith.constant 0 : i32
    %c0_i32_1 = arith.constant 0 : i32
    return %c0_i32, %c0_i32_0 : i32, i32
  }
  func.func @transform_10(%arg0: i32) -> (i32, i32) {
    %c0_i32 = arith.constant 0 : i32
    %c0_i32_0 = arith.constant 0 : i32
    %c0_i32_1 = arith.constant 0 : i32
    return %c0_i32, %c0_i32_0 : i32, i32
  }
  func.func @transform_11(%arg0: i32) -> (i32, i32) {
    %c0_i32 = arith.constant 0 : i32
    %c0_i32_0 = arith.constant 0 : i32
    %c0_i32_1 = arith.constant 0 : i32
    return %c0_i32, %c0_i32_0 : i32, i32
  }
  func.func @transform_12(%arg0: i32) -> (i32, i32) {
    %c0_i32 = arith.constant 0 : i32
    %c0_i32_0 = arith.constant 0 : i32
    %c0_i32_1 = arith.constant 0 : i32
    return %c0_i32, %c0_i32_0 : i32, i32
  }
  func.func @transform_13(%arg0: i32) -> (i32, i32, i32) {
    %c0_i32 = arith.constant 0 : i32
    %c0_i32_0 = arith.constant 0 : i32
    %c0_i32_1 = arith.constant 0 : i32
    return %arg0, %c0_i32, %c0_i32_0 : i32, i32, i32
  }
}

</mosaic_0001>

<llo_original>
// kernel: tpu_custom_call.1
$region0: #{tpu_custom_call.1}
  #allocation0 [shape = 'u32[]', space=smem, size = 0x4, offset = 0x4, fixed_abs, tag = 'smem constant byte address 0x4 - core index']
  #allocation1 [shape = 'u32[144,128]{1,0:T(1,128)}', space=vmem, size = 0x12000, scoped, tag = 'internal scratch']
  #allocation2 [shape = 'f32[8,16]{1,0:T(8,128)}', space=vmem, size = 0x1000, scoped, tag = 'scratch operand']
  %s0 = inlined_call_operand.vmem [shape: f32[8,1], index: 0, kind: input, shape index: {}]
  %s1 = inlined_call_operand.vmem [shape: f32[2,8,4], index: 1, kind: input, shape index: {}]
  %s2 = inlined_call_operand.hbm [shape: f32[2,4,8], index: 2, kind: input, shape index: {}]
  %s3 = inlined_call_operand.vmem [shape: f32[1,16], index: 3, kind: input, shape index: {}]
  %s4 = inlined_call_operand.vmem [shape: f32[1,16], index: 4, kind: input, shape index: {}]
  %s5 = inlined_call_operand.vmem [shape: f32[1,16], index: 5, kind: input, shape index: {}]
  %s6 = inlined_call_operand.vmem [shape: f32[1,16], index: 6, kind: input, shape index: {}]
  %s7 = inlined_call_operand.vmem [shape: f32[16,16], index: 7, kind: input, shape index: {}]
  %s8 = inlined_call_operand.vmem [shape: f32[1,16], index: 8, kind: input, shape index: {}]
  %s9 = inlined_call_operand.vmem [shape: f32[1,16], index: 9, kind: input, shape index: {}]
  %s10 = inlined_call_operand.vmem [shape: f32[1,16], index: 10, kind: input, shape index: {}]
  %s11 = inlined_call_operand.vmem [shape: f32[16,16], index: 11, kind: input, shape index: {}]
  %s12 = inlined_call_operand.vmem [shape: f32[1,16], index: 12, kind: input, shape index: {}]
  %s13 = inlined_call_operand.hbm [shape: f32[2,8,128], index: 13, kind: output, shape index: {}]
  %s14 = sld [smem:[#allocation0]]
  $region93: #{tpu_custom_call.1} parent=0
    _
  %s16 = ssub.s32 1, %s14
  %s17 = scalar_select 0, %s16, %s14
  $region1: #{tpu_custom_call.1} parent=0
    #allocation3 [shape = 'u8[4096]{0}', space=vmem, size = 0x1000, scoped, tag = 'input window, operand 2']
    #allocation4 [shape = 's32[2]{0}', space=sflag, size = 0x8, scoped, tag = 'scoped memory for tpu_custom_call.1']
    #allocation5 [shape = 's32[2]{0}', space=sflag, size = 0x8, scoped, tag = 'scoped memory for tpu_custom_call.1']
    #allocation6 [shape = 'u8[8192]{0}', space=vmem, size = 0x2000, scoped, tag = 'output window, operand 0']
    %18 = vsyncpa [#allocation4], 0
    %s19 = scalar_lea.sflag [#allocation4], 1
    %20 = vsyncpa %s19, 0
    %21 = vsyncpa [#allocation5], 0
    %s22 = scalar_lea.sflag [#allocation5], 1
    %23 = vsyncpa %s22, 0
    loop: start=0, step=1, limit=4
    $region2: #{tpu_custom_call.1} parent=1 // loop_pre_header
      _
    $region3: #{tpu_custom_call.1} parent=1 // loop_header
      %s25 = sphi 0, %s29
      %p26 = scmp.ge.s32.totalorder %s25, 4
      %s33 = sphi 0, %s33
      %s35 = sphi 0, %s33
      %s36 = sphi 0, %s35
      %s50 = sphi 0, %s36
      %s56 = sphi 0, %s58
      %s59 = sphi 0, %s56
      %s60 = sphi 0, %s59
      %s76 = sphi 0, %s60
      %s82 = sphi 0, %s84
      %s85 = sphi 0, %s82
      %s86 = sphi 0, %s85
      %s102 = sphi 0, %s86
      %s106 = sphi 0, %s106
      %s108 = sphi 0, %s106
      %s109 = sphi 0, %s108
      %s123 = sphi 0, %s109
      %s127 = sphi 0, %s127
      %s129 = sphi 0, %s127
      %s130 = sphi 0, %s129
      %s144 = sphi 0, %s130
      %s148 = sphi 0, %s148
      %s150 = sphi 0, %s148
      %s151 = sphi 0, %s150
      %s165 = sphi 0, %s151
      %s169 = sphi 0, %s169
      %s171 = sphi 0, %s169
      %s172 = sphi 0, %s171
      %s186 = sphi 0, %s172
      %s190 = sphi 0, %s190
      %s192 = sphi 0, %s190
      %s193 = sphi 0, %s192
      %s207 = sphi 0, %s193
      %s211 = sphi 0, %s211
      %s213 = sphi 0, %s211
      %s214 = sphi 0, %s213
      %s228 = sphi 0, %s214
      %s232 = sphi 0, %s232
      %s234 = sphi 0, %s232
      %s235 = sphi 0, %s234
      %s249 = sphi 0, %s235
      %s253 = sphi 0, %s253
      %s255 = sphi 0, %s253
      %s256 = sphi 0, %s255
      %s270 = sphi 0, %s256
      %s274 = sphi 0, %s274
      %s276 = sphi 0, %s274
      %s277 = sphi 0, %s276
      %s291 = sphi 0, %s277
      %s295 = sphi 0, %s295
      %s297 = sphi 0, %s295
      %s298 = sphi 0, %s297
      %s312 = sphi 0, %s298
      %s318 = sphi 0, %s320
      %s321 = sphi 0, %s318
      %s322 = sphi 0, %s321
      %s338 = sphi 0, %s322
    $region4: #{tpu_custom_call.1} parent=1 // loop_header_branch
      %28 = sbr.rel (%p26) target = $region8
    $region5: #{tpu_custom_call.1} parent=1 // loop_body
      %s30 = ssub.s32 %s25, 1
      %s31 = ssub.s32 %s25, 2
      %s32 = sadd.s32 %s25, 1
      %s34 = sadd.s32 %s33, 1
      %p37 = scmp.eq.s32.totalorder %s25, 1
      %p38 = scmp.ne.s32.totalorder %s33, %s35
      %p39 = scmp.eq.s32.totalorder %s25, 0
      %p40 = por %p38, %p39
      %p41 = scmp.ne.s32.totalorder %s33, %s35
      %p42 = scmp.eq.s32.totalorder %s30, 1
      %p43 = por %p41, %p42
      %p44 = scmp.ne.s32.totalorder %s35, %s36
      %p45 = scmp.eq.s32.totalorder %s30, 0
      %p46 = por %p44, %p45
      %p47 = scmp.ne.s32.totalorder %s35, %s36
      %p48 = scmp.eq.s32.totalorder %s31, 1
      %p49 = por %p47, %p48
      %p51 = scmp.ne.s32.totalorder %s36, %s50
      %p52 = scmp.eq.s32.totalorder %s31, 0
      %p53 = por %p51, %p52
      %s54 = ssub.s32 %s25, %s32
      %p55 = scmp.eq.s32.totalorder %s54, 0
      %s57 = sadd.s32 %s56, 1
      %s58 = scalar_select %p55, %s56, %s57
      %p61 = pneg %p55
      %p62 = scmp.eq.s32.totalorder %s25, 1
      %p63 = por %p61, %p62
      %p64 = scmp.ne.s32.totalorder %s56, %s59
      %p65 = scmp.eq.s32.totalorder %s25, 0
      %p66 = por %p64, %p65
      %p67 = scmp.ne.s32.totalorder %s56, %s59
      %p68 = scmp.eq.s32.totalorder %s30, 1
      %p69 = por %p67, %p68
      %p70 = scmp.ne.s32.totalorder %s59, %s60
      %p71 = scmp.eq.s32.totalorder %s30, 0
      %p72 = por %p70, %p71
      %p73 = scmp.ne.s32.totalorder %s59, %s60
      %p74 = scmp.eq.s32.totalorder %s31, 1
      %p75 = por %p73, %p74
      %p77 = scmp.ne.s32.totalorder %s60, %s76
      %p78 = scmp.eq.s32.totalorder %s31, 0
      %p79 = por %p77, %p78
      %s80 = ssub.s32 %s25, %s32
      %p81 = scmp.eq.s32.totalorder %s80, 0
      %s83 = sadd.s32 %s82, 1
      %s84 = scalar_select %p81, %s82, %s83
      %p87 = pneg %p81
      %p88 = scmp.eq.s32.totalorder %s25, 1
      %p89 = por %p87, %p88
      %p90 = scmp.ne.s32.totalorder %s82, %s85
      %p91 = scmp.eq.s32.totalorder %s25, 0
      %p92 = por %p90, %p91
      %p93 = scmp.ne.s32.totalorder %s82, %s85
      %p94 = scmp.eq.s32.totalorder %s30, 1
      %p95 = por %p93, %p94
      %p96 = scmp.ne.s32.totalorder %s85, %s86
      %p97 = scmp.eq.s32.totalorder %s30, 0
      %p98 = por %p96, %p97
      %p99 = scmp.ne.s32.totalorder %s85, %s86
      %p100 = scmp.eq.s32.totalorder %s31, 1
      %p101 = por %p99, %p100
      %p103 = scmp.ne.s32.totalorder %s86, %s102
      %p104 = scmp.eq.s32.totalorder %s31, 0
      %p105 = por %p103, %p104
      %s107 = sadd.s32 %s106, 1
      %p110 = scmp.eq.s32.totalorder %s25, 1
      %p111 = scmp.ne.s32.totalorder %s106, %s108
      %p112 = scmp.eq.s32.totalorder %s25, 0
      %p113 = por %p111, %p112
      %p114 = scmp.ne.s32.totalorder %s106, %s108
      %p115 = scmp.eq.s32.totalorder %s30, 1
      %p116 = por %p114, %p115
      %p117 = scmp.ne.s32.totalorder %s108, %s109
      %p118 = scmp.eq.s32.totalorder %s30, 0
      %p119 = por %p117, %p118
      %p120 = scmp.ne.s32.totalorder %s108, %s109
      %p121 = scmp.eq.s32.totalorder %s31, 1
      %p122 = por %p120, %p121
      %p124 = scmp.ne.s32.totalorder %s109, %s123
      %p125 = scmp.eq.s32.totalorder %s31, 0
      %p126 = por %p124, %p125
      %s128 = sadd.s32 %s127, 1
      %p131 = scmp.eq.s32.totalorder %s25, 1
      %p132 = scmp.ne.s32.totalorder %s127, %s129
      %p133 = scmp.eq.s32.totalorder %s25, 0
      %p134 = por %p132, %p133
      %p135 = scmp.ne.s32.totalorder %s127, %s129
      %p136 = scmp.eq.s32.totalorder %s30, 1
      %p137 = por %p135, %p136
      %p138 = scmp.ne.s32.totalorder %s129, %s130
      %p139 = scmp.eq.s32.totalorder %s30, 0
      %p140 = por %p138, %p139
      %p141 = scmp.ne.s32.totalorder %s129, %s130
      %p142 = scmp.eq.s32.totalorder %s31, 1
      %p143 = por %p141, %p142
      %p145 = scmp.ne.s32.totalorder %s130, %s144
      %p146 = scmp.eq.s32.totalorder %s31, 0
      %p147 = por %p145, %p146
      %s149 = sadd.s32 %s148, 1
      %p152 = scmp.eq.s32.totalorder %s25, 1
      %p153 = scmp.ne.s32.totalorder %s148, %s150
      %p154 = scmp.eq.s32.totalorder %s25, 0
      %p155 = por %p153, %p154
      %p156 = scmp.ne.s32.totalorder %s148, %s150
      %p157 = scmp.eq.s32.totalorder %s30, 1
      %p158 = por %p156, %p157
      %p159 = scmp.ne.s32.totalorder %s150, %s151
      %p160 = scmp.eq.s32.totalorder %s30, 0
      %p161 = por %p159, %p160
      %p162 = scmp.ne.s32.totalorder %s150, %s151
      %p163 = scmp.eq.s32.totalorder %s31, 1
      %p164 = por %p162, %p163
      %p166 = scmp.ne.s32.totalorder %s151, %s165
      %p167 = scmp.eq.s32.totalorder %s31, 0
      %p168 = por %p166, %p167
      %s170 = sadd.s32 %s169, 1
      %p173 = scmp.eq.s32.totalorder %s25, 1
      %p174 = scmp.ne.s32.totalorder %s169, %s171
      %p175 = scmp.eq.s32.totalorder %s25, 0
      %p176 = por %p174, %p175
      %p177 = scmp.ne.s32.totalorder %s169, %s171
      %p178 = scmp.eq.s32.totalorder %s30, 1
      %p179 = por %p177, %p178
      %p180 = scmp.ne.s32.totalorder %s171, %s172
      %p181 = scmp.eq.s32.totalorder %s30, 0
      %p182 = por %p180, %p181
      %p183 = scmp.ne.s32.totalorder %s171, %s172
      %p184 = scmp.eq.s32.totalorder %s31, 1
      %p185 = por %p183, %p184
      %p187 = scmp.ne.s32.totalorder %s172, %s186
      %p188 = scmp.eq.s32.totalorder %s31, 0
      %p189 = por %p187, %p188
      %s191 = sadd.s32 %s190, 1
      %p194 = scmp.eq.s32.totalorder %s25, 1
      %p195 = scmp.ne.s32.totalorder %s190, %s192
      %p196 = scmp.eq.s32.totalorder %s25, 0
      %p197 = por %p195, %p196
      %p198 = scmp.ne.s32.totalorder %s190, %s192
      %p199 = scmp.eq.s32.totalorder %s30, 1
      %p200 = por %p198, %p199
      %p201 = scmp.ne.s32.totalorder %s192, %s193
      %p202 = scmp.eq.s32.totalorder %s30, 0
      %p203 = por %p201, %p202
      %p204 = scmp.ne.s32.totalorder %s192, %s193
      %p205 = scmp.eq.s32.totalorder %s31, 1
      %p206 = por %p204, %p205
      %p208 = scmp.ne.s32.totalorder %s193, %s207
      %p209 = scmp.eq.s32.totalorder %s31, 0
      %p210 = por %p208, %p209
      %s212 = sadd.s32 %s211, 1
      %p215 = scmp.eq.s32.totalorder %s25, 1
      %p216 = scmp.ne.s32.totalorder %s211, %s213
      %p217 = scmp.eq.s32.totalorder %s25, 0
      %p218 = por %p216, %p217
      %p219 = scmp.ne.s32.totalorder %s211, %s213
      %p220 = scmp.eq.s32.totalorder %s30, 1
      %p221 = por %p219, %p220
      %p222 = scmp.ne.s32.totalorder %s213, %s214
      %p223 = scmp.eq.s32.totalorder %s30, 0
      %p224 = por %p222, %p223
      %p225 = scmp.ne.s32.totalorder %s213, %s214
      %p226 = scmp.eq.s32.totalorder %s31, 1
      %p227 = por %p225, %p226
      %p229 = scmp.ne.s32.totalorder %s214, %s228
      %p230 = scmp.eq.s32.totalorder %s31, 0
      %p231 = por %p229, %p230
      %s233 = sadd.s32 %s232, 1
      %p236 = scmp.eq.s32.totalorder %s25, 1
      %p237 = scmp.ne.s32.totalorder %s232, %s234
      %p238 = scmp.eq.s32.totalorder %s25, 0
      %p239 = por %p237, %p238
      %p240 = scmp.ne.s32.totalorder %s232, %s234
      %p241 = scmp.eq.s32.totalorder %s30, 1
      %p242 = por %p240, %p241
      %p243 = scmp.ne.s32.totalorder %s234, %s235
      %p244 = scmp.eq.s32.totalorder %s30, 0
      %p245 = por %p243, %p244
      %p246 = scmp.ne.s32.totalorder %s234, %s235
      %p247 = scmp.eq.s32.totalorder %s31, 1
      %p248 = por %p246, %p247
      %p250 = scmp.ne.s32.totalorder %s235, %s249
      %p251 = scmp.eq.s32.totalorder %s31, 0
      %p252 = por %p250, %p251
      %s254 = sadd.s32 %s253, 1
      %p257 = scmp.eq.s32.totalorder %s25, 1
      %p258 = scmp.ne.s32.totalorder %s253, %s255
      %p259 = scmp.eq.s32.totalorder %s25, 0
      %p260 = por %p258, %p259
      %p261 = scmp.ne.s32.totalorder %s253, %s255
      %p262 = scmp.eq.s32.totalorder %s30, 1
      %p263 = por %p261, %p262
      %p264 = scmp.ne.s32.totalorder %s255, %s256
      %p265 = scmp.eq.s32.totalorder %s30, 0
      %p266 = por %p264, %p265
      %p267 = scmp.ne.s32.totalorder %s255, %s256
      %p268 = scmp.eq.s32.totalorder %s31, 1
      %p269 = por %p267, %p268
      %p271 = scmp.ne.s32.totalorder %s256, %s270
      %p272 = scmp.eq.s32.totalorder %s31, 0
      %p273 = por %p271, %p272
      %s275 = sadd.s32 %s274, 1
      %p278 = scmp.eq.s32.totalorder %s25, 1
      %p279 = scmp.ne.s32.totalorder %s274, %s276
      %p280 = scmp.eq.s32.totalorder %s25, 0
      %p281 = por %p279, %p280
      %p282 = scmp.ne.s32.totalorder %s274, %s276
      %p283 = scmp.eq.s32.totalorder %s30, 1
      %p284 = por %p282, %p283
      %p285 = scmp.ne.s32.totalorder %s276, %s277
      %p286 = scmp.eq.s32.totalorder %s30, 0
      %p287 = por %p285, %p286
      %p288 = scmp.ne.s32.totalorder %s276, %s277
      %p289 = scmp.eq.s32.totalorder %s31, 1
      %p290 = por %p288, %p289
      %p292 = scmp.ne.s32.totalorder %s277, %s291
      %p293 = scmp.eq.s32.totalorder %s31, 0
      %p294 = por %p292, %p293
      %s296 = sadd.s32 %s295, 1
      %p299 = scmp.eq.s32.totalorder %s25, 1
      %p300 = scmp.ne.s32.totalorder %s295, %s297
      %p301 = scmp.eq.s32.totalorder %s25, 0
      %p302 = por %p300, %p301
      %p303 = scmp.ne.s32.totalorder %s295, %s297
      %p304 = scmp.eq.s32.totalorder %s30, 1
      %p305 = por %p303, %p304
      %p306 = scmp.ne.s32.totalorder %s297, %s298
      %p307 = scmp.eq.s32.totalorder %s30, 0
      %p308 = por %p306, %p307
      %p309 = scmp.ne.s32.totalorder %s297, %s298
      %p310 = scmp.eq.s32.totalorder %s31, 1
      %p311 = por %p309, %p310
      %p313 = scmp.ne.s32.totalorder %s298, %s312
      %p314 = scmp.eq.s32.totalorder %s31, 0
      %p315 = por %p313, %p314
      %s316 = ssub.s32 %s25, %s32
      %p317 = scmp.eq.s32.totalorder %s316, 0
      %s319 = sadd.s32 %s318, 1
      %s320 = scalar_select %p317, %s318, %s319
      %p323 = pneg %p317
      %p324 = scmp.eq.s32.totalorder %s25, 1
      %p325 = por %p323, %p324
      %p326 = scmp.ne.s32.totalorder %s318, %s321
      %p327 = scmp.eq.s32.totalorder %s25, 0
      %p328 = por %p326, %p327
      %p329 = scmp.ne.s32.totalorder %s318, %s321
      %p330 = scmp.eq.s32.totalorder %s30, 1
      %p331 = por %p329, %p330
      %p332 = scmp.ne.s32.totalorder %s321, %s322
      %p333 = scmp.eq.s32.totalorder %s30, 0
      %p334 = por %p332, %p333
      %p335 = scmp.ne.s32.totalorder %s321, %s322
      %p336 = scmp.eq.s32.totalorder %s31, 1
      %p337 = por %p335, %p336
      %p339 = scmp.ne.s32.totalorder %s322, %s338
      %p340 = scmp.eq.s32.totalorder %s31, 0
      %p341 = por %p339, %p340
      %p342 = scmp.le.s32.totalorder 1, %s25
      %p343 = scmp.lt.s32.totalorder %s25, 3
      %p344 = pnand %p342, %p343
      %p345 = pneg %p344
      // Predicated region
      $region9: #{tpu_custom_call.1} parent=5 // pred_check
        _
      $region10: #{tpu_custom_call.1} parent=5 // pred_check_branch
        %347 = sbr.rel (%p344) target = $region12
      $region11: #{tpu_custom_call.1} parent=5 // pred_region
        %s348 = ssub.s32 %s25, 1
        // Predicated region
        $region13: #{tpu_custom_call.1} parent=11 // pred_check
          %p349 = pneg %p46
        $region14: #{tpu_custom_call.1} parent=11 // pred_check_branch
          %351 = sbr.rel (%p349) target = $region16
        $region15: #{tpu_custom_call.1} parent=11 // pred_region
          _
        $region16: #{tpu_custom_call.1} parent=11 // pred_fallthru
          _
        // Predicated region
        $region17: #{tpu_custom_call.1} parent=11 // pred_check
          %p352 = pneg %p119
        $region18: #{tpu_custom_call.1} parent=11 // pred_check_branch
          %354 = sbr.rel (%p352) target = $region20
        $region19: #{tpu_custom_call.1} parent=11 // pred_region
          _
        $region20: #{tpu_custom_call.1} parent=11 // pred_fallthru
          _
        // Predicated region
        $region21: #{tpu_custom_call.1} parent=11 // pred_check
          %p355 = pneg %p140
        $region22: #{tpu_custom_call.1} parent=11 // pred_check_branch
          %357 = sbr.rel (%p355) target = $region24
        $region23: #{tpu_custom_call.1} parent=11 // pred_region
          _
        $region24: #{tpu_custom_call.1} parent=11 // pred_fallthru
          _
        // Predicated region
        $region25: #{tpu_custom_call.1} parent=11 // pred_check
          %p358 = pneg %p161
        $region26: #{tpu_custom_call.1} parent=11 // pred_check_branch
          %360 = sbr.rel (%p358) target = $region28
        $region27: #{tpu_custom_call.1} parent=11 // pred_region
          _
        $region28: #{tpu_custom_call.1} parent=11 // pred_fallthru
          _
        // Predicated region
        $region29: #{tpu_custom_call.1} parent=11 // pred_check
          %p361 = pneg %p182
        $region30: #{tpu_custom_call.1} parent=11 // pred_check_branch
          %363 = sbr.rel (%p361) target = $region32
        $region31: #{tpu_custom_call.1} parent=11 // pred_region
          _
        $region32: #{tpu_custom_call.1} parent=11 // pred_fallthru
          _
        // Predicated region
        $region33: #{tpu_custom_call.1} parent=11 // pred_check
          %p364 = pneg %p203
        $region34: #{tpu_custom_call.1} parent=11 // pred_check_branch
          %366 = sbr.rel (%p364) target = $region36
        $region35: #{tpu_custom_call.1} parent=11 // pred_region
          _
        $region36: #{tpu_custom_call.1} parent=11 // pred_fallthru
          _
        // Predicated region
        $region37: #{tpu_custom_call.1} parent=11 // pred_check
          %p367 = pneg %p224
        $region38: #{tpu_custom_call.1} parent=11 // pred_check_branch
          %369 = sbr.rel (%p367) target = $region40
        $region39: #{tpu_custom_call.1} parent=11 // pred_region
          _
        $region40: #{tpu_custom_call.1} parent=11 // pred_fallthru
          _
        // Predicated region
        $region41: #{tpu_custom_call.1} parent=11 // pred_check
          %p370 = pneg %p245
        $region42: #{tpu_custom_call.1} parent=11 // pred_check_branch
          %372 = sbr.rel (%p370) target = $region44
        $region43: #{tpu_custom_call.1} parent=11 // pred_region
          _
        $region44: #{tpu_custom_call.1} parent=11 // pred_fallthru
          _
        // Predicated region
        $region45: #{tpu_custom_call.1} parent=11 // pred_check
          %p373 = pneg %p266
        $region46: #{tpu_custom_call.1} parent=11 // pred_check_branch
          %375 = sbr.rel (%p373) target = $region48
        $region47: #{tpu_custom_call.1} parent=11 // pred_region
          _
        $region48: #{tpu_custom_call.1} parent=11 // pred_fallthru
          _
        // Predicated region
        $region49: #{tpu_custom_call.1} parent=11 // pred_check
          %p376 = pneg %p287
        $region50: #{tpu_custom_call.1} parent=11 // pred_check_branch
          %378 = sbr.rel (%p376) target = $region52
        $region51: #{tpu_custom_call.1} parent=11 // pred_region
          _
        $region52: #{tpu_custom_call.1} parent=11 // pred_fallthru
          _
        // Predicated region
        $region53: #{tpu_custom_call.1} parent=11 // pred_check
          %p379 = pneg %p308
        $region54: #{tpu_custom_call.1} parent=11 // pred_check_branch
          %381 = sbr.rel (%p379) target = $region56
        $region55: #{tpu_custom_call.1} parent=11 // pred_region
          _
        $region56: #{tpu_custom_call.1} parent=11 // pred_fallthru
          _
      $region12: #{tpu_custom_call.1} parent=5 // pred_fallthru
        _
      %p382 = scmp.lt.s32.totalorder %s25, 2
      // Predicated region
      $region57: #{tpu_custom_call.1} parent=5 // pred_check
        %p383 = pneg %p382
      $region58: #{tpu_custom_call.1} parent=5 // pred_check_branch
        %385 = sbr.rel (%p383) target = $region60
      $region59: #{tpu_custom_call.1} parent=5 // pred_region
        // Predicated region
        $region61: #{tpu_custom_call.1} parent=59 // pred_check
          %p386 = pneg %p66
        $region62: #{tpu_custom_call.1} parent=59 // pred_check_branch
          %388 = sbr.rel (%p386) target = $region64
        $region63: #{tpu_custom_call.1} parent=59 // pred_region
          %p389 = scmp.lt.s32.totalorder %s25, 1
          %s390 = scalar_select %p389, %s25, 1
          %s391 = smul.addr %s390, 8
          %s392 = scalar_lea.vmem %s1, %s391
        $region64: #{tpu_custom_call.1} parent=59 // pred_fallthru
          _
        // Predicated region
        $region65: #{tpu_custom_call.1} parent=59 // pred_check
          %p393 = pneg %p92
        $region66: #{tpu_custom_call.1} parent=59 // pred_check_branch
          %395 = sbr.rel (%p393) target = $region68
        $region67: #{tpu_custom_call.1} parent=59 // pred_region
          %s396 = sand.u32 %s82, 1
          %s397 = scalar_lea.sflag [#allocation4], %s396
          %s398 = sand.u32 %s82, 1
          %s399 = smul.addr %s398, 4
          %s400 = scalar_lea.vmem [#allocation3], %s399
          %s402 = ssub.s32 64, 64
          %403 = vsyncadd %s397, %s402
          %s404 = smul.addr %s25, 64
          %s405 = scalar_lea.hbm %s2, %s404
          %s407 = sshll.u32 %s400, 4
          %s408 = int_to_ptr.vmem [resolvable:$true] %s407
          %410 = dma.hbm_to_vmem [thread:$0]  %s405, 64, %s408, %s397
        $region68: #{tpu_custom_call.1} parent=59 // pred_fallthru
          _
      $region60: #{tpu_custom_call.1} parent=5 // pred_fallthru
        _
      %p411 = scmp.le.s32.totalorder 1, %s25
      %p412 = scmp.lt.s32.totalorder %s25, 3
      %p413 = pnand %p411, %p412
      %p414 = pneg %p413
      // Predicated region
      $region69: #{tpu_custom_call.1} parent=5 // pred_check
        _
      $region70: #{tpu_custom_call.1} parent=5 // pred_check_branch
        %416 = sbr.rel (%p413) target = $region72
      $region71: #{tpu_custom_call.1} parent=5 // pred_region
        %s417 = ssub.s32 %s25, 1
        %s418 = sand.u32 %s85, 1
        %s419 = scalar_lea.sflag [#allocation4], %s418
        %s420 = sand.u32 %s85, 1
        %s421 = smul.addr %s420, 4
        %s422 = scalar_lea.vmem [#allocation3], %s421
        // Predicated region
        $region73: #{tpu_custom_call.1} parent=71 // pred_check
          %p423 = pneg %p98
        $region74: #{tpu_custom_call.1} parent=71 // pred_check_branch
          %425 = sbr.rel (%p423) target = $region76
        $region75: #{tpu_custom_call.1} parent=71 // pred_region
          %426 = dma.done %s419, 64
        $region76: #{tpu_custom_call.1} parent=71 // pred_fallthru
          _
        %p427 = pneg %p46
        %p428 = pneg %p43
        %p429 = scmp.lt.s32.totalorder %s30, 1
        %s430 = scalar_select %p429, %s30, 1
        %s431 = smul.addr %s430, 8
        %s432 = scalar_lea.vmem %s1, %s431
        %p433 = pneg %p72
        %p434 = pneg %p69
        %s435 = sand.u32 %s85, 1
        %s436 = scalar_lea.sflag [#allocation4], %s435
        %s437 = sand.u32 %s85, 1
        %s438 = smul.addr %s437, 4
        %s439 = scalar_lea.vmem [#allocation3], %s438
        %p440 = pneg %p98
        %p441 = pneg %p95
        %p442 = pneg %p119
        %p443 = pneg %p116
        %p444 = pneg %p140
        %p445 = pneg %p137
        %p446 = pneg %p161
        %p447 = pneg %p158
        %p448 = pneg %p182
        %p449 = pneg %p179
        %p450 = pneg %p203
        %p451 = pneg %p200
        %p452 = pneg %p224
        %p453 = pneg %p221
        %p454 = pneg %p245
        %p455 = pneg %p242
        %p456 = pneg %p266
        %p457 = pneg %p263
        %p458 = pneg %p287
        %p459 = pneg %p284
        %p460 = pneg %p308
        %p461 = pneg %p305
        %p462 = pneg %p334
        %p463 = pneg %p331
        %s464 = sand.u32 %s321, 1
        %s465 = scalar_lea.sflag [#allocation5], %s464
        %s466 = sand.u32 %s321, 1
        %s467 = smul.addr %s466, 8
        %s468 = scalar_lea.vmem [#allocation6], %s467
        %p469 = scmp.lt.s32.totalorder %s30, 1
        %s470 = scalar_select %p469, %s30, 1
        %s471 = smul.addr %s470, 8
        %s472 = scalar_lea.vmem %s1, %s471
        %p473 = scmp.eq.s32.totalorder %s30, 0
        // Predicated region
        $region77: #{tpu_custom_call.1} parent=71 // pred_check
          %p474 = pneg %p473
        $region78: #{tpu_custom_call.1} parent=71 // pred_check_branch
          %476 = sbr.rel (%p474) target = $region80
        $region79: #{tpu_custom_call.1} parent=71 // pred_region
          %v477 = vld [vmem:[%s0] sm:$0xff]
          %v478 = vld [vmem:[%s3] sm:$0x1]
          %480 = vset.pattern.permute.xlu0 0
          %481 = vperm.xlu0 %480, %v477
          %v482 = vpop.permute.xlu0 %481
          %v485 = vlaneseq
          %v486 = vshrl.u32 %v485, 7
          %v487 = vsub.s32 0, %v486
          %v488 = vrot.slane %v478, %v487
          %v490 = vmul.f32 %v482, %v488
          %v491 = vld [vmem:[%s4] sm:$0x1]
          %v493 = vlaneseq
          %v494 = vshrl.u32 %v493, 7
          %v495 = vsub.s32 0, %v494
          %v496 = vrot.slane %v491, %v495
          %v498 = vadd.f32 %v490, %v496
          %vm499 = vcmask 130048
          %v500 = vsel %vm499, %v498, 0.0
          %v501 = vrot.slane %v500, 4
          %v502 = vadd.f32 %v500, %v501
          %v503 = vrot.slane %v502, 2
          %v504 = vadd.f32 %v502, %v503
          %v505 = vrot.slane %v504, 1
          %v506 = vadd.f32 %v504, %v505
          %v507 = vrcp.pop 8.0
          %v508 = vmul.f32 %v506, %v507
          %v509 = vsub.f32 %v498, %v508
          %v510 = vmul.f32 %v509, %v509
          %v511 = vsel %vm499, %v510, 0.0
          %v512 = vrot.slane %v511, 4
          %v513 = vadd.f32 %v511, %v512
          %v514 = vrot.slane %v513, 2
          %v515 = vadd.f32 %v513, %v514
          %v516 = vrot.slane %v515, 1
          %v517 = vadd.f32 %v515, %v516
          %v518 = vmul.f32 %v517, %v507
          %v519 = vadd.f32 %v518, 1e-05
          %v520 = vrsqrt.pop %v519
          %v521 = vmul.f32 %v509, %v520
          %v522 = vld [vmem:[%s5] sm:$0x1]
          %v524 = vlaneseq
          %v525 = vshrl.u32 %v524, 7
          %v526 = vsub.s32 0, %v525
          %v527 = vrot.slane %v522, %v526
          %v529 = vmul.f32 %v521, %v527
          %v530 = vld [vmem:[%s6] sm:$0x1]
          %v532 = vlaneseq
          %v533 = vshrl.u32 %v532, 7
          %v534 = vsub.s32 0, %v533
          %v535 = vrot.slane %v530, %v534
          %v537 = vadd.f32 %v529, %v535
          %v538 = vmax.f32 %v537, 0.0
          %v539 = vld [vmem:[%s7] sm:$0xff]
          %v540 = vld [vmem:[%s7 + $0x8] sm:$0xff]
          %v541 = vld [vmem:[%s8] sm:$0x1]
          %v543 = vlaneseq
          %v544 = vshrl.u32 %v543, 7
          %v545 = vsub.s32 0, %v544
          %v546 = vrot.slane %v541, %v545
          %v549 = vsel %vm499, %v538, 0
          %551 = vmatprep.subr.mxu0 0.0
          %552 = vmatpush1.msra.mxu0 0.0
          %553 = vmatprep.subr.mxu0 0.0
          %554 = vmatpush1.msra.mxu0 0.0
          %555 = vmatprep.subr.mxu0 0.0
          %556 = vmatpush1.msra.mxu0 0.0
          %557 = vmatprep.subr.mxu0 0.0
          %558 = vmatpush1.msra.mxu0 0.0
          %559 = vmatprep.subr.mxu0 0.0
          %560 = vmatpush1.msra.mxu0 0.0
          %561 = vmatprep.subr.mxu0 0.0
          %562 = vmatpush1.msra.mxu0 0.0
          %563 = vmatprep.subr.mxu0 0.0
          %564 = vmatpush1.msra.mxu0 0.0
          %565 = vmatprep.subr.mxu0 0.0
          %566 = vmatpush1.msra.mxu0 0.0
          %567 = vmatprep.subr.mxu0 0.0
          %568 = vmatpush1.msra.mxu0 0.0
          %569 = vmatprep.subr.mxu0 0.0
          %570 = vmatpush1.msra.mxu0 0.0
          %571 = vmatprep.subr.mxu0 0.0
          %572 = vmatpush1.msra.mxu0 0.0
          %573 = vmatprep.subr.mxu0 0.0
          %574 = vmatpush1.msra.mxu0 0.0
          %575 = vmatprep.subr.mxu0 0.0
          %576 = vmatpush1.msra.mxu0 0.0
          %577 = vmatprep.subr.mxu0 0.0
          %578 = vmatpush1.msra.mxu0 0.0
          %579 = vmatprep.subr.mxu0 0.0
          %580 = vmatpush1.msra.mxu0 %v540
          %581 = vmatprep.subr.mxu0 0.0
          %582 = vmatpush1.msra.mxu0 %v539
          %583 = vmatprep.subr.mxu0 0.0
          %584 = vmatpush2.msra.mxu0 0.0
          %585 = vmatprep.subr.mxu0 0.0
          %586 = vmatpush2.msra.mxu0 0.0
          %587 = vmatprep.subr.mxu0 0.0
          %588 = vmatpush2.msra.mxu0 0.0
          %589 = vmatprep.subr.mxu0 0.0
          %590 = vmatpush2.msra.mxu0 0.0
          %591 = vmatprep.subr.mxu0 0.0
          %592 = vmatpush2.msra.mxu0 0.0
          %593 = vmatprep.subr.mxu0 0.0
          %594 = vmatpush2.msra.mxu0 0.0
          %595 = vmatprep.subr.mxu0 0.0
          %596 = vmatpush2.msra.mxu0 0.0
          %597 = vmatprep.subr.mxu0 0.0
          %598 = vmatpush2.msra.mxu0 0.0
          %599 = vmatprep.subr.mxu0 0.0
          %600 = vmatpush2.msra.mxu0 0.0
          %601 = vmatprep.subr.mxu0 0.0
          %602 = vmatpush2.msra.mxu0 0.0
          %603 = vmatprep.subr.mxu0 0.0
          %604 = vmatpush2.msra.mxu0 0.0
          %605 = vmatprep.subr.mxu0 0.0
          %606 = vmatpush2.msra.mxu0 0.0
          %607 = vmatprep.subr.mxu0 0.0
          %608 = vmatpush2.msra.mxu0 0.0
          %609 = vmatprep.subr.mxu0 0.0
          %610 = vmatpush2.msra.mxu0 0.0
          %611 = vmatprep.subr.mxu0 0.0
          %612 = vmatpush2.msra.mxu0 0.0
          %613 = vmatprep.subr.mxu0 0.0
          %614 = vmatpush2.msra.mxu0 0.0
          %615 = vmatprep.mubr.f32.mxu0 0.0
          %616 = vmatmul.mubr.f32.gmra.mxu0 %v549
          %v617 = vpop.f32.mrf.mxu0
          %v618 = vadd.f32 %v546, %v617
          %v619 = vpop.f32.mrf.mxu0
          %620 = vdwg.mxu0
          %v621 = vsel %vm499, %v618, 0.0
          %v622 = vrot.slane %v621, 4
          %v623 = vadd.f32 %v621, %v622
          %v624 = vrot.slane %v623, 2
          %v625 = vadd.f32 %v623, %v624
          %v626 = vrot.slane %v625, 1
          %v627 = vadd.f32 %v625, %v626
          %v628 = vmul.f32 %v627, %v507
          %v629 = vsub.f32 %v618, %v628
          %v630 = vmul.f32 %v629, %v629
          %v631 = vsel %vm499, %v630, 0.0
          %v632 = vrot.slane %v631, 4
          %v633 = vadd.f32 %v631, %v632
          %v634 = vrot.slane %v633, 2
          %v635 = vadd.f32 %v633, %v634
          %v636 = vrot.slane %v635, 1
          %v637 = vadd.f32 %v635, %v636
          %v638 = vmul.f32 %v637, %v507
          %v639 = vadd.f32 %v638, 1e-05
          %v640 = vrsqrt.pop %v639
          %v641 = vmul.f32 %v629, %v640
          %v642 = vld [vmem:[%s9] sm:$0x1]
          %v644 = vlaneseq
          %v645 = vshrl.u32 %v644, 7
          %v646 = vsub.s32 0, %v645
          %v647 = vrot.slane %v642, %v646
          %v649 = vmul.f32 %v641, %v647
          %v650 = vld [vmem:[%s10] sm:$0x1]
          %v652 = vlaneseq
          %v653 = vshrl.u32 %v652, 7
          %v654 = vsub.s32 0, %v653
          %v655 = vrot.slane %v650, %v654
          %v657 = vadd.f32 %v649, %v655
          %v658 = vmax.f32 %v657, 0.0
          %v659 = vld [vmem:[%s11] sm:$0xff]
          %v660 = vld [vmem:[%s11 + $0x8] sm:$0xff]
          %v661 = vld [vmem:[%s12] sm:$0x1]
          %v663 = vlaneseq
          %v664 = vshrl.u32 %v663, 7
          %v665 = vsub.s32 0, %v664
          %v666 = vrot.slane %v661, %v665
          %v669 = vsel %vm499, %v658, 0
          %671 = vmatprep.subr.mxu0 0.0
          %672 = vmatpush1.msra.mxu0 0.0
          %673 = vmatprep.subr.mxu0 0.0
          %674 = vmatpush1.msra.mxu0 0.0
          %675 = vmatprep.subr.mxu0 0.0
          %676 = vmatpush1.msra.mxu0 0.0
          %677 = vmatprep.subr.mxu0 0.0
          %678 = vmatpush1.msra.mxu0 0.0
          %679 = vmatprep.subr.mxu0 0.0
          %680 = vmatpush1.msra.mxu0 0.0
          %681 = vmatprep.subr.mxu0 0.0
          %682 = vmatpush1.msra.mxu0 0.0
          %683 = vmatprep.subr.mxu0 0.0
          %684 = vmatpush1.msra.mxu0 0.0
          %685 = vmatprep.subr.mxu0 0.0
          %686 = vmatpush1.msra.mxu0 0.0
          %687 = vmatprep.subr.mxu0 0.0
          %688 = vmatpush1.msra.mxu0 0.0
          %689 = vmatprep.subr.mxu0 0.0
          %690 = vmatpush1.msra.mxu0 0.0
          %691 = vmatprep.subr.mxu0 0.0
          %692 = vmatpush1.msra.mxu0 0.0
          %693 = vmatprep.subr.mxu0 0.0
          %694 = vmatpush1.msra.mxu0 0.0
          %695 = vmatprep.subr.mxu0 0.0
          %696 = vmatpush1.msra.mxu0 0.0
          %697 = vmatprep.subr.mxu0 0.0
          %698 = vmatpush1.msra.mxu0 0.0
          %699 = vmatprep.subr.mxu0 0.0
          %700 = vmatpush1.msra.mxu0 %v660
          %701 = vmatprep.subr.mxu0 0.0
          %702 = vmatpush1.msra.mxu0 %v659
          %703 = vmatprep.subr.mxu0 0.0
          %704 = vmatpush2.msra.mxu0 0.0
          %705 = vmatprep.subr.mxu0 0.0
          %706 = vmatpush2.msra.mxu0 0.0
          %707 = vmatprep.subr.mxu0 0.0
          %708 = vmatpush2.msra.mxu0 0.0
          %709 = vmatprep.subr.mxu0 0.0
          %710 = vmatpush2.msra.mxu0 0.0
          %711 = vmatprep.subr.mxu0 0.0
          %712 = vmatpush2.msra.mxu0 0.0
          %713 = vmatprep.subr.mxu0 0.0
          %714 = vmatpush2.msra.mxu0 0.0
          %715 = vmatprep.subr.mxu0 0.0
          %716 = vmatpush2.msra.mxu0 0.0
          %717 = vmatprep.subr.mxu0 0.0
          %718 = vmatpush2.msra.mxu0 0.0
          %719 = vmatprep.subr.mxu0 0.0
          %720 = vmatpush2.msra.mxu0 0.0
          %721 = vmatprep.subr.mxu0 0.0
          %722 = vmatpush2.msra.mxu0 0.0
          %723 = vmatprep.subr.mxu0 0.0
          %724 = vmatpush2.msra.mxu0 0.0
          %725 = vmatprep.subr.mxu0 0.0
          %726 = vmatpush2.msra.mxu0 0.0
          %727 = vmatprep.subr.mxu0 0.0
          %728 = vmatpush2.msra.mxu0 0.0
          %729 = vmatprep.subr.mxu0 0.0
          %730 = vmatpush2.msra.mxu0 0.0
          %731 = vmatprep.subr.mxu0 0.0
          %732 = vmatpush2.msra.mxu0 0.0
          %733 = vmatprep.subr.mxu0 0.0
          %734 = vmatpush2.msra.mxu0 0.0
          %735 = vmatprep.mubr.f32.mxu0 0.0
          %736 = vmatmul.mubr.f32.gmra.mxu0 %v669
          %v737 = vpop.f32.mrf.mxu0
          %v738 = vadd.f32 %v666, %v737
          %v739 = vpop.f32.mrf.mxu0
          %740 = vdwg.mxu0
          %741 = vst.msk [vmem:[#allocation2] sm:$0xff] %vm499, %v738
        $region80: #{tpu_custom_call.1} parent=71 // pred_fallthru
          _
        %s742 = smul.u32 %s30, 4
        %s743 = scalar_lea.vmem [#allocation2], %s742
        %v744 = vld [vmem:[%s743] sm:$0xf]
        %v745 = vld [vmem:[%s472] sm:$0xff]
        %v746 = vld [vmem:[%s422] sm:$0xf]
        %v747 = vlaneseq
        %v748 = vshrl.u32 %v747, 7
        %v749 = vsub.s32 0, %v748
        %v750 = vrot.slane %v746, %v749
        %752 = vbcast.lane.b32.xlu0 %v750, 256
        %v753 = vpop.permute.xlu0 %752
        %v754 = vlaneseq
        %v755 = vshrl.u32 %v754, 7
        %v756 = vsub.s32 1, %v755
        %v757 = vrot.slane %v746, %v756
        %759 = vbcast.lane.b32.xlu0 %v757, 256
        %v760 = vpop.permute.xlu0 %759
        %v761 = vlaneseq
        %v762 = vshrl.u32 %v761, 7
        %v763 = vsub.s32 2, %v762
        %v764 = vrot.slane %v746, %v763
        %766 = vbcast.lane.b32.xlu0 %v764, 256
        %v767 = vpop.permute.xlu0 %766
        %v768 = vlaneseq
        %v769 = vshrl.u32 %v768, 7
        %v770 = vsub.s32 3, %v769
        %v771 = vrot.slane %v746, %v770
        %773 = vbcast.lane.b32.xlu0 %v771, 256
        %v774 = vpop.permute.xlu0 %773
        %v777 = vunpack.c.l.s4 1966171168
        %v778 = vunpack.c.0.s8 %v777
        %v779 = vlaneseq
        %v780 = vshrl.u32 %v779, 7
        %v781 = vsub.s32 %v778, %v780
        %v782 = vrot.slane %v744, %v781
        %v783 = vcombine.high %v782, %v782
        %v785 = vunpack.c.l.s4 1966171168
        %v786 = vunpack.c.0.s8 %v785
        %v787 = vlaneseq
        %v788 = vshrl.u32 %v787, 7
        %v789 = vsub.s32 %v786, %v788
        %v790 = vrot.slane %v782, %v789
        %v792 = vunpack.c.l.s4 1966171168
        %v793 = vunpack.c.0.s8 %v792
        %v794 = vlaneseq
        %v795 = vshrl.u32 %v794, 7
        %v796 = vsub.s32 %v793, %v795
        %v797 = vrot.slane %v783, %v796
        %v798 = vcombine.high %v790, %v790
        %v799 = vcombine.high %v797, %v797
        %v800 = vlaneseq
        %v801 = vshrl.u32 %v800, 7
        %v802 = vsub.s32 0, %v801
        %v803 = vrot.slane %v790, %v802
        %v804 = vlaneseq
        %v805 = vshrl.u32 %v804, 7
        %v806 = vsub.s32 0, %v805
        %v807 = vrot.slane %v797, %v806
        %v808 = vlaneseq
        %v809 = vshrl.u32 %v808, 7
        %v810 = vsub.s32 0, %v809
        %v811 = vrot.slane %v798, %v810
        %v812 = vlaneseq
        %v813 = vshrl.u32 %v812, 7
        %v814 = vsub.s32 0, %v813
        %v815 = vrot.slane %v799, %v814
        %v820 = vmul.f32 %v753, %v803
        %v821 = vmul.f32 %v760, %v807
        %v822 = vmul.f32 %v767, %v811
        %v823 = vmul.f32 %v774, %v815
        %v824 = vcombine.low %v820, %v822
        %v825 = vcombine.high %v820, %v822
        %v827 = vunpack.c.l.s4 1983009808
        %v828 = vunpack.c.0.s8 %v827
        %v829 = vlaneseq
        %v830 = vshrl.u32 %v829, 7
        %v831 = vsub.s32 %v828, %v830
        %v832 = vrot.slane %v824, %v831
        %v834 = vunpack.c.l.s4 1983009808
        %v835 = vunpack.c.0.s8 %v834
        %v836 = vlaneseq
        %v837 = vshrl.u32 %v836, 7
        %v838 = vsub.s32 %v835, %v837
        %v839 = vrot.slane %v825, %v838
        %v840 = vcombine.low %v821, %v823
        %v841 = vcombine.high %v821, %v823
        %v843 = vunpack.c.l.s4 1983009808
        %v844 = vunpack.c.0.s8 %v843
        %v845 = vlaneseq
        %v846 = vshrl.u32 %v845, 7
        %v847 = vsub.s32 %v844, %v846
        %v848 = vrot.slane %v840, %v847
        %v850 = vunpack.c.l.s4 1983009808
        %v851 = vunpack.c.0.s8 %v850
        %v852 = vlaneseq
        %v853 = vshrl.u32 %v852, 7
        %v854 = vsub.s32 %v851, %v853
        %v855 = vrot.slane %v841, %v854
        %v856 = vcombine.low %v832, %v848
        %v857 = vcombine.high %v832, %v848
        %v859 = vunpack.c.l.s4 1934713408
        %v860 = vunpack.c.0.s8 %v859
        %v861 = vlaneseq
        %v862 = vshrl.u32 %v861, 7
        %v863 = vsub.s32 %v860, %v862
        %v864 = vrot.slane %v856, %v863
        %v866 = vunpack.c.l.s4 1934713408
        %v867 = vunpack.c.0.s8 %v866
        %v868 = vlaneseq
        %v869 = vshrl.u32 %v868, 7
        %v870 = vsub.s32 %v867, %v869
        %v871 = vrot.slane %v857, %v870
        %v872 = vcombine.low %v839, %v855
        %v873 = vcombine.high %v839, %v855
        %v875 = vunpack.c.l.s4 1934713408
        %v876 = vunpack.c.0.s8 %v875
        %v877 = vlaneseq
        %v878 = vshrl.u32 %v877, 7
        %v879 = vsub.s32 %v876, %v878
        %v880 = vrot.slane %v872, %v879
        %v882 = vunpack.c.l.s4 1934713408
        %v883 = vunpack.c.0.s8 %v882
        %v884 = vlaneseq
        %v885 = vshrl.u32 %v884, 7
        %v886 = vsub.s32 %v883, %v885
        %v887 = vrot.slane %v873, %v886
        %v888 = vcombine.high %v864, 0.0
        %v889 = vcombine.high %v871, 0.0
        %v890 = vcombine.high %v880, 0.0
        %v891 = vcombine.high %v887, 0.0
        %893 = vrot.lane.b32.xlu0 %v888, 16
        %v894 = vpop.permute.xlu0 %893
        %897 = vrot.lane.b32.xlu0 %v871, 32
        %v898 = vpop.permute.xlu0 %897
        %901 = vrot.lane.b32.xlu0 %v889, 48
        %v902 = vpop.permute.xlu0 %901
        %905 = vrot.lane.b32.xlu0 %v880, 64
        %v906 = vpop.permute.xlu0 %905
        %909 = vrot.lane.b32.xlu0 %v890, 80
        %v910 = vpop.permute.xlu0 %909
        %913 = vrot.lane.b32.xlu0 %v887, 96
        %v914 = vpop.permute.xlu0 %913
        %917 = vrot.lane.b32.xlu0 %v891, 112
        %v918 = vpop.permute.xlu0 %917
        %vm920 = vcmask 130048
        %v921 = vsel %vm920, %v864, %v894
        %vm922 = vcmask 261120
        %v923 = vsel %vm922, %v921, %v898
        %vm924 = vcmask 392192
        %v925 = vsel %vm924, %v923, %v902
        %vm926 = vcmask 523264
        %v927 = vsel %vm926, %v925, %v906
        %vm928 = vcmask 654336
        %v929 = vsel %vm928, %v927, %v910
        %vm930 = vcmask 785408
        %v931 = vsel %vm930, %v929, %v914
        %vm932 = vcmask 916480
        %v933 = vsel %vm932, %v931, %v918
        %vm934 = vcmask 31744
        %v936 = vsel %vm934, %v745, 0
        %vm938 = vcmask 1043456
        %v940 = vsel %vm938, %v933, 0
        %942 = vmatprep.subr.mxu0 0.0
        %943 = vmatpush1.msra.mxu0 0.0
        %944 = vmatprep.subr.mxu0 0.0
        %945 = vmatpush1.msra.mxu0 0.0
        %946 = vmatprep.subr.mxu0 0.0
        %947 = vmatpush1.msra.mxu0 0.0
        %948 = vmatprep.subr.mxu0 0.0
        %949 = vmatpush1.msra.mxu0 0.0
        %950 = vmatprep.subr.mxu0 0.0
        %951 = vmatpush1.msra.mxu0 0.0
        %952 = vmatprep.subr.mxu0 0.0
        %953 = vmatpush1.msra.mxu0 0.0
        %954 = vmatprep.subr.mxu0 0.0
        %955 = vmatpush1.msra.mxu0 0.0
        %956 = vmatprep.subr.mxu0 0.0
        %957 = vmatpush1.msra.mxu0 0.0
        %958 = vmatprep.subr.mxu0 0.0
        %959 = vmatpush1.msra.mxu0 0.0
        %960 = vmatprep.subr.mxu0 0.0
        %961 = vmatpush1.msra.mxu0 0.0
        %962 = vmatprep.subr.mxu0 0.0
        %963 = vmatpush1.msra.mxu0 0.0
        %964 = vmatprep.subr.mxu0 0.0
        %965 = vmatpush1.msra.mxu0 0.0
        %966 = vmatprep.subr.mxu0 0.0
        %967 = vmatpush1.msra.mxu0 0.0
        %968 = vmatprep.subr.mxu0 0.0
        %969 = vmatpush1.msra.mxu0 0.0
        %970 = vmatprep.subr.mxu0 0.0
        %971 = vmatpush1.msra.mxu0 0.0
        %972 = vmatprep.subr.mxu0 0.0
        %973 = vmatpush1.msra.mxu0 %v940
        %974 = vmatprep.subr.mxu0 0.0
        %975 = vmatpush2.msra.mxu0 0.0
        %976 = vmatprep.subr.mxu0 0.0
        %977 = vmatpush2.msra.mxu0 0.0
        %978 = vmatprep.subr.mxu0 0.0
        %979 = vmatpush2.msra.mxu0 0.0
        %980 = vmatprep.subr.mxu0 0.0
        %981 = vmatpush2.msra.mxu0 0.0
        %982 = vmatprep.subr.mxu0 0.0
        %983 = vmatpush2.msra.mxu0 0.0
        %984 = vmatprep.subr.mxu0 0.0
        %985 = vmatpush2.msra.mxu0 0.0
        %986 = vmatprep.subr.mxu0 0.0
        %987 = vmatpush2.msra.mxu0 0.0
        %988 = vmatprep.subr.mxu0 0.0
        %989 = vmatpush2.msra.mxu0 0.0
        %990 = vmatprep.subr.mxu0 0.0
        %991 = vmatpush2.msra.mxu0 0.0
        %992 = vmatprep.subr.mxu0 0.0
        %993 = vmatpush2.msra.mxu0 0.0
        %994 = vmatprep.subr.mxu0 0.0
        %995 = vmatpush2.msra.mxu0 0.0
        %996 = vmatprep.subr.mxu0 0.0
        %997 = vmatpush2.msra.mxu0 0.0
        %998 = vmatprep.subr.mxu0 0.0
        %999 = vmatpush2.msra.mxu0 0.0
        %1000 = vmatprep.subr.mxu0 0.0
        %1001 = vmatpush2.msra.mxu0 0.0
        %1002 = vmatprep.subr.mxu0 0.0
        %1003 = vmatpush2.msra.mxu0 0.0
        %1004 = vmatprep.subr.mxu0 0.0
        %1005 = vmatpush2.msra.mxu0 0.0
        %1006 = vmatprep.mubr.f32.mxu0 0.0
        %1007 = vmatmul.mubr.f32.gmra.mxu0 %v936
        %v1008 = vpop.f32.mrf.mxu0
        %v1009 = vadd.f32 0.0, %v1008
        %v1010 = vpop.f32.mrf.mxu0
        %1011 = vdwg.mxu0
        %1012 = vst [vmem:[%s468] sm:$0xff] %v1009
        %s1013 = sand.u32 %s321, 1
        %s1014 = scalar_lea.sflag [#allocation5], %s1013
        %s1015 = sand.u32 %s321, 1
        %s1016 = smul.addr %s1015, 8
        %s1017 = scalar_lea.vmem [#allocation6], %s1016
        // Predicated region
        $region81: #{tpu_custom_call.1} parent=71 // pred_check
          %p1018 = pneg %p331
        $region82: #{tpu_custom_call.1} parent=71 // pred_check_branch
          %1020 = sbr.rel (%p1018) target = $region84
        $region83: #{tpu_custom_call.1} parent=71 // pred_region
          %s1022 = ssub.s32 128, 128
          %1023 = vsyncadd %s1014, %s1022
          %s1024 = smul.addr %s30, 128
          %s1025 = scalar_lea.hbm %s13, %s1024
          %s1027 = sshll.u32 %s1017, 4
          %s1028 = int_to_ptr.vmem [resolvable:$true] %s1027
          %1030 = dma.vmem_to_hbm [thread:$0]  %s1028, 128, %s1025, %s1014
        $region84: #{tpu_custom_call.1} parent=71 // pred_fallthru
          _
      $region72: #{tpu_custom_call.1} parent=5 // pred_fallthru
        _
      %p1031 = scmp.le.s32.totalorder 2, %s25
      // Predicated region
      $region85: #{tpu_custom_call.1} parent=5 // pred_check
        %p1032 = pneg %p1031
      $region86: #{tpu_custom_call.1} parent=5 // pred_check_branch
        %1034 = sbr.rel (%p1032) target = $region88
      $region87: #{tpu_custom_call.1} parent=5 // pred_region
        %s1035 = ssub.s32 %s25, 2
        // Predicated region
        $region89: #{tpu_custom_call.1} parent=87 // pred_check
          %p1036 = pneg %p337
        $region90: #{tpu_custom_call.1} parent=87 // pred_check_branch
          %1038 = sbr.rel (%p1036) target = $region92
        $region91: #{tpu_custom_call.1} parent=87 // pred_region
          %s1039 = sand.u32 %s322, 1
          %s1040 = scalar_lea.sflag [#allocation5], %s1039
          %s1041 = sand.u32 %s322, 1
          %s1042 = smul.addr %s1041, 8
          %s1043 = scalar_lea.vmem [#allocation6], %s1042
          %1044 = dma.done %s1040, 128
        $region92: #{tpu_custom_call.1} parent=87 // pred_fallthru
          _
      $region88: #{tpu_custom_call.1} parent=5 // pred_fallthru
        _
    $region6: #{tpu_custom_call.1} parent=1 // loop_footer
      %s29 = sadd.s32 1, %s25
    $region7: #{tpu_custom_call.1} parent=1 // loop_footer_branch
      %24 = sbr.rel target = $region3
    $region8: #{tpu_custom_call.1} parent=1 // loop_exit
      _
    %1045 = vsyncpa [#allocation4], 1
    %s1046 = scalar_lea.sflag [#allocation4], 1
    %1047 = vsyncpa %s1046, 1
    %1048 = vsyncpa [#allocation5], 1
    %s1049 = scalar_lea.sflag [#allocation5], 1
    %1050 = vsyncpa %s1049, 1

</llo_original>
